<compile_context>
chip_gen: v7x
topology: tpu7x:2x2x1
jax: 0.10.0
libtpu: 0.0.40
codegen_flags: <defaults>
</compile_context>

<pallas_src>
import functools
import math

import jax
import jax.numpy as jnp
from jax.experimental import pallas as pl
from jax.experimental.pallas import tpu as pltpu


# --------------------------------------------------------------------------
# helpers
# --------------------------------------------------------------------------
def _round_up(x, m):
    return ((x + m - 1) // m) * m


@functools.lru_cache(maxsize=None)
def _vmem_limit():
    """3/4 of physical VMEM, capped at 96 MiB (96M on v5e/v6e, 48M on v7x)."""
    try:
        cap = int(pltpu.get_tpu_info().vmem_capacity_bytes)
        return int(min(cap * 3 // 4, 96 * 1024 * 1024))
    except Exception:
        return 64 * 1024 * 1024          # safe everywhere, 2x the 32M default


def _pick_channel_tile(c, hw, budget_bytes=1 * 1024 * 1024):
    """Largest channel tile (== c, or a multiple of 8 dividing c) whose (Ct,HW)
    f32 slab fits the budget.  Depthwise conv needs no channel halo."""
    valid = [ct for ct in range(1, c + 1)
             if c % ct == 0 and (ct == c or ct % 8 == 0)]
    fitting = [ct for ct in valid if ct * hw * 4 <= budget_bytes]
    if fitting:
        return max(fitting)
    # TODO(synk): tile H*W with a (K-1)-row halo when one channel row is huge.
    return min(valid)


# --------------------------------------------------------------------------
# Coordinate-based MLP, natural orientation: out[p, j] = MLP(coords[p])[j].
# Weights resident in VMEM (constant index_map); layer 1 on the VPU (2-wide
# contraction as broadcast FMAs), layers 2-4 on the MXU with f32 accumulation.
# Natural orientation makes torch's row-major `.view` of the output free.
# --------------------------------------------------------------------------
def _mlp_kernel(c_ref, w1_ref, b1_ref, w2_ref, b2_ref, w3_ref, b3_ref,
                w4_ref, b4_ref, o_ref):
    cy = c_ref[:, 0:1]                                          # (TP, 1)
    cx = c_ref[:, 1:2]                                          # (TP, 1)
    h = cy * w1_ref[0:1, :] + cx * w1_ref[1:2, :] + b1_ref[...]  # VPU layer 1
    h = jnp.maximum(h, 0.0)
    h = jnp.dot(h, w2_ref[...], preferred_element_type=jnp.float32) + b2_ref[...]
    h = jnp.maximum(h, 0.0)
    h = jnp.dot(h, w3_ref[...], preferred_element_type=jnp.float32) + b3_ref[...]
    h = jnp.maximum(h, 0.0)
    o_ref[...] = jnp.dot(h, w4_ref[...], preferred_element_type=jnp.float32) + b4_ref[...]


def coordinate_mlp(coords, params):
    """coords: (N, 2) f32 -> (N, out_dim) f32."""
    n = coords.shape[0]
    hid = params["w2"].shape[0]
    out_dim = params["w4"].shape[1]
    tp = min(_round_up(n, 8), 512)                # sublane-aligned row tile
    n_pad = _round_up(n, tp)
    if n_pad != n:
        coords = jnp.pad(coords, ((0, n_pad - n), (0, 0)))
    wspec = lambda shape: pl.BlockSpec(shape, lambda i: (0, 0))   # resident
    out = pl.pallas_call(
        _mlp_kernel,
        out_shape=jax.ShapeDtypeStruct((n_pad, out_dim), jnp.float32),
        grid=(n_pad // tp,),
        in_specs=[
            pl.BlockSpec((tp, 2), lambda i: (i, 0)),
            wspec((2, hid)), wspec((1, hid)),
            wspec((hid, hid)), wspec((1, hid)),
            wspec((hid, hid)), wspec((1, hid)),
            wspec((hid, out_dim)), wspec((1, out_dim)),
        ],
        out_specs=pl.BlockSpec((tp, out_dim), lambda i: (i, 0)),
        compiler_params=pltpu.CompilerParams(
            dimension_semantics=("parallel",),
            vmem_limit_bytes=_vmem_limit()),
    )(coords, params["w1"], params["b1"], params["w2"], params["b2"],
      params["w3"], params["b3"], params["w4"], params["b4"])
    return out[:n] if n_pad != n else out


# --------------------------------------------------------------------------
# Global path: out[b, f] = z[b, f] * k[f], f over C*H*W (flat, no-op reshape).
# Data viewed as (rows, 128) so blocks are both sublane- and lane-dense and the
# DMAs are contiguous ~1 MiB chunks.  Grid = (spatial, batch) with batch
# innermost so the k block stays VMEM-resident across the batch loop.
# --------------------------------------------------------------------------
def _gate_kernel(z_ref, k_ref, o_ref):
    o_ref[0] = (z_ref[0] * k_ref[...]).astype(o_ref.dtype)


def global_gate(z_flat2, k_vec):
    """z_flat2: (B, M); k_vec: (M,) f32.  Returns (B, M) in z's dtype."""
    B, M = z_flat2.shape
    LANES = 128
    rows = -(-M // LANES)
    tr = min(_round_up(rows, 8), 2048)            # <= 1 MiB f32 per block
    rows_pad = _round_up(rows, tr)
    m_pad = rows_pad * LANES
    if m_pad != M:                                 # ragged: pad, never one-block
        z_flat2 = jnp.pad(z_flat2, ((0, 0), (0, m_pad - M)))
        k_vec = jnp.pad(k_vec, ((0, m_pad - M),))
    z3 = z_flat2.reshape(B, rows_pad, LANES)
    k2 = k_vec.reshape(rows_pad, LANES).astype(jnp.float32)
    out = pl.pallas_call(
        _gate_kernel,
        out_shape=jax.ShapeDtypeStruct((B, rows_pad, LANES), z_flat2.dtype),
        grid=(rows_pad // tr, B),                  # batch innermost -> k resident
        in_specs=[
            pl.BlockSpec((1, tr, LANES), lambda s, b: (b, s, 0)),
            pl.BlockSpec((tr, LANES), lambda s, b: (s, 0)),
        ],
        out_specs=pl.BlockSpec((1, tr, LANES), lambda s, b: (b, s, 0)),
        compiler_params=pltpu.CompilerParams(
            dimension_semantics=("parallel", "arbitrary"),
            vmem_limit_bytes=_vmem_limit()),
    )(z3, k2)
    out = out.reshape(B, m_pad)
    return out[:, :M] if m_pad != M else out


# --------------------------------------------------------------------------
# Local path: depthwise conv in flattened NCHW (H*W lane-dense), channel-tiled.
# The (Ct, HW) tile is copied once into a zero-halo VMEM scratch; the K*K taps
# are static shifted slices * per-channel tap weights; the x-validity mask
# depends only on the horizontal tap offset dj, so it is factored out of the
# vertical (di) sum -> one mask multiply per dj instead of per tap.  Vertical
# borders are handled for free by the zero halo.
# --------------------------------------------------------------------------
def _dwconv_kernel(z_ref, filt_ref, mask_ref, o_ref, pad_ref, *, K, W, HW, S):
    Ct = z_ref.shape[1]
    p = K // 2
    if S > 0:   # zero only the halo; the interior is fully overwritten below
        pad_ref[:, 0:S] = jnp.zeros((Ct, S), jnp.float32)
        pad_ref[:, S + HW:] = jnp.zeros((Ct, S), jnp.float32)
    pad_ref[:, S:S + HW] = z_ref[0].astype(jnp.float32)
    filt = filt_ref[...]                       # (Ct, K*K) read once (hoisted)
    mask = mask_ref[...]                       # (K, HW)   read once (hoisted)
    acc = jnp.zeros((Ct, HW), jnp.float32)
    for dj in range(K):
        inner = jnp.zeros((Ct, HW), jnp.float32)
        for di in range(K):
            s = (di - p) * W + (dj - p)
            idx = di * K + dj
            inner = inner + pad_ref[:, S + s:S + s + HW] * filt[:, idx:idx + 1]
        if dj == p:                            # centre column: mask is all-ones
            acc = acc + inner
        else:
            acc = acc + inner * mask[dj:dj + 1, :]
    o_ref[0] = acc.astype(o_ref.dtype)


def depthwise_conv_flat(z_flat, filt, H, W, K):
    """z_flat: (B, C, H*W); filt: (C, K*K); 'same' depthwise conv, odd K."""
    B, C, HW = z_flat.shape
    p = K // 2
    S = _round_up(p * W + p, 128) if p > 0 else 0      # lane-aligned halo
    # only K distinct x-validity masks (they depend on dj only)
    x = jnp.arange(HW, dtype=jnp.int32) % W
    mask = jnp.stack(
        [((x + (dj - p) >= 0) & (x + (dj - p) < W)).astype(jnp.float32)
         for dj in range(K)], axis=0)                   # (K, HW)
    Ct = _pick_channel_tile(C, HW)
    kern = functools.partial(_dwconv_kernel, K=K, W=W, HW=HW, S=S)
    return pl.pallas_call(
        kern,
        out_shape=jax.ShapeDtypeStruct((B, C, HW), z_flat.dtype),
        grid=(B, C // Ct),
        in_specs=[
            pl.BlockSpec((1, Ct, HW), lambda b, cb: (b, cb, 0)),
            pl.BlockSpec((Ct, K * K), lambda b, cb: (cb, 0)),
            pl.BlockSpec((K, HW), lambda b, cb: (0, 0)),
        ],
        out_specs=pl.BlockSpec((1, Ct, HW), lambda b, cb: (b, cb, 0)),
        scratch_shapes=[pltpu.VMEM((Ct, HW + 2 * S), jnp.float32)],
        compiler_params=pltpu.CompilerParams(
            dimension_semantics=("parallel", "parallel"),   # v7x: both TCs busy
            vmem_limit_bytes=_vmem_limit()),
    )(z_flat, filt, mask)


# --------------------------------------------------------------------------
# Pure-JAX reference MLP used for verification.
# --------------------------------------------------------------------------
def _mlp_reference(coords, params):
    hp = jax.lax.Precision.HIGHEST
    h = jnp.dot(coords, params["w1"], precision=hp) + params["b1"]
    h = jnp.maximum(h, 0.0)
    h = jnp.dot(h, params["w2"], precision=hp) + params["b2"]
    h = jnp.maximum(h, 0.0)
    h = jnp.dot(h, params["w3"], precision=hp) + params["b3"]
    h = jnp.maximum(h, 0.0)
    return jnp.dot(h, params["w4"], precision=hp) + params["b4"]


# --------------------------------------------------------------------------
# Module wrapper
# --------------------------------------------------------------------------
def _init_mlp(key, dims):
    """PyTorch-Linear-style uniform init; weights stored (in, out)."""
    params = {}
    keys = jax.random.split(key, 2 * (len(dims) - 1))
    for i in range(len(dims) - 1):
        fan_in, fan_out = dims[i], dims[i + 1]
        bound = 1.0 / math.sqrt(fan_in)
        params[f"w{i + 1}"] = jax.random.uniform(
            keys[2 * i], (fan_in, fan_out), jnp.float32, -bound, bound)
        params[f"b{i + 1}"] = jax.random.uniform(
            keys[2 * i + 1], (1, fan_out), jnp.float32, -bound, bound)
    return params


class HyperZZW:
    def __init__(self, channels, kernel_size, is_global=False, key=None):
        self.channels = channels
        self.kernel_size = kernel_size
        self.is_global = is_global
        assert is_global or kernel_size % 2 == 1, "local path supports odd kernel_size"
        output_dim = channels * (kernel_size * kernel_size if not is_global else 1)
        if key is None:
            key = jax.random.PRNGKey(0)
        self.params = _init_mlp(key, [2, 64, 64, 64, output_dim])

    def _get_coords(self, h, w):
        ch = jnp.linspace(-1.0, 1.0, h)
        cw = jnp.linspace(-1.0, 1.0, w)
        gy, gx = jnp.meshgrid(ch, cw, indexing="ij")
        return jnp.stack([gy.reshape(-1), gx.reshape(-1)], axis=1).astype(jnp.float32)

    def __call__(self, z):                       # z: (B, C, H, W) NCHW
        b, c, h, w = z.shape
        hw = h * w
        if self.is_global:
            mlp_out = coordinate_mlp(self._get_coords(h, w), self.params)  # (HW, C)
            # torch `.view(1, c, h, w)` of the (HW, C) MLP output is a pure
            # row-major reinterpretation: as a flat gate it is exactly
            # mlp_out.reshape(-1) -- no transpose / relayout pass needed.
            k_vec = mlp_out.reshape(-1)                                    # (C*HW,)
            out = global_gate(z.reshape(b, c * hw), k_vec)
            return out.reshape(b, c, h, w)
        ks = self.kernel_size
        mlp_out = coordinate_mlp(self._get_coords(ks, ks), self.params)    # (k*k, C*k*k)
        # TODO(synk): reference .view(c,1,k,k) is shape-inconsistent for k>1;
        # resolved by mean-pooling over the k*k coordinates (as before).
        filt = mlp_out.mean(axis=0).reshape(c, ks * ks)
        out = depthwise_conv_flat(z.reshape(b, c, hw), filt, h, w, ks)
        return out.reshape(b, c, h, w)


# --------------------------------------------------------------------------
if __name__ == "__main__":
    key = jax.random.PRNGKey(0)
    kz, km_local, km_global = jax.random.split(key, 3)

    B, C, H, W = 2, 4, 16, 16
    z = jax.random.normal(kz, (B, C, H, W), jnp.float32)

    # ---- local (depthwise hyper-conv) variant ----
    ks = 3
    mod_local = HyperZZW(C, kernel_size=ks, is_global=False, key=km_local)
    out_local = jax.block_until_ready(mod_local(z))
    assert out_local.shape == (B, C, H, W)

    mlp_ref_l = _mlp_reference(mod_local._get_coords(ks, ks), mod_local.params)
    filt_ref = mlp_ref_l.mean(axis=0).reshape(C, 1, ks, ks)
    ref_local = jax.lax.conv_general_dilated(
        z, filt_ref, window_strides=(1, 1),
        padding=[(ks // 2, ks // 2), (ks // 2, ks // 2)],
        dimension_numbers=("NCHW", "OIHW", "NCHW"), feature_group_count=C,
        precision=jax.lax.Precision.HIGHEST)
    err_l = float(jnp.max(jnp.abs(out_local - ref_local)))
    assert jnp.allclose(out_local, ref_local, atol=1e-3, rtol=1e-3), err_l

    # ---- global (elementwise hyper-gate) variant ----
    mod_global = HyperZZW(C, kernel_size=ks, is_global=True, key=km_global)
    out_global = jax.block_until_ready(mod_global(z))
    assert out_global.shape == (B, C, H, W)

    mlp_ref_g = _mlp_reference(mod_global._get_coords(H, W), mod_global.params)  # (HW, C)
    ref_global = z * mlp_ref_g.reshape(1, C, H, W)      # exact torch .view semantics
    err_g = float(jnp.max(jnp.abs(out_global - ref_global)))
    assert jnp.allclose(out_global, ref_global, atol=1e-3, rtol=1e-3), err_g

    print("KERNEL_OK")
</pallas_src>

<mosaic_0001>
module attributes {stable_mosaic.version = 11 : i64} {
  func.func @_mlp_kernel(%arg0: i32, %arg1: memref<16x2xf32, #tpu.memory_space<vmem>>, %arg2: memref<2x64xf32, #tpu.memory_space<vmem>>, %arg3: memref<1x64xf32, #tpu.memory_space<vmem>>, %arg4: memref<64x64xf32, #tpu.memory_space<vmem>>, %arg5: memref<1x64xf32, #tpu.memory_space<vmem>>, %arg6: memref<64x64xf32, #tpu.memory_space<vmem>>, %arg7: memref<1x64xf32, #tpu.memory_space<vmem>>, %arg8: memref<64x36xf32, #tpu.memory_space<vmem>>, %arg9: memref<1x36xf32, #tpu.memory_space<vmem>>, %arg10: memref<16x36xf32, #tpu.memory_space<vmem>>) attributes {dimension_semantics = [#tpu.dimension_semantics<parallel>], iteration_bounds = array<i64: 1>, scalar_prefetch = 0 : i64, scratch_operands = 0 : i64, tpu.core_type = #tpu.core_type<tc>, window_params = [{transform_indices = @transform_0, window_bounds = array<i64: 16, 2>}, {pipeline_mode = #tpu.pipeline_mode<synchronous>, transform_indices = @transform_1, window_bounds = array<i64: 2, 64>}, {pipeline_mode = #tpu.pipeline_mode<synchronous>, transform_indices = @transform_2, window_bounds = array<i64: 1, 64>}, {pipeline_mode = #tpu.pipeline_mode<synchronous>, transform_indices = @transform_3, window_bounds = array<i64: 64, 64>}, {pipeline_mode = #tpu.pipeline_mode<synchronous>, transform_indices = @transform_4, window_bounds = array<i64: 1, 64>}, {pipeline_mode = #tpu.pipeline_mode<synchronous>, transform_indices = @transform_5, window_bounds = array<i64: 64, 64>}, {pipeline_mode = #tpu.pipeline_mode<synchronous>, transform_indices = @transform_6, window_bounds = array<i64: 1, 64>}, {pipeline_mode = #tpu.pipeline_mode<synchronous>, transform_indices = @transform_7, window_bounds = array<i64: 64, 36>}, {pipeline_mode = #tpu.pipeline_mode<synchronous>, transform_indices = @transform_8, window_bounds = array<i64: 1, 36>}, {transform_indices = @transform_9, window_bounds = array<i64: 16, 36>}]} {
    %c0 = arith.constant 0 : index
    %c0_0 = arith.constant 0 : index
    %0 = vector.load %arg1[%c0, %c0_0] : memref<16x2xf32, #tpu.memory_space<vmem>>, vector<16x1xf32>
    %c0_1 = arith.constant 0 : index
    %c1 = arith.constant 1 : index
    %1 = vector.load %arg1[%c0_1, %c1] : memref<16x2xf32, #tpu.memory_space<vmem>>, vector<16x1xf32>
    %c0_2 = arith.constant 0 : index
    %c0_3 = arith.constant 0 : index
    %2 = vector.load %arg2[%c0_2, %c0_3] : memref<2x64xf32, #tpu.memory_space<vmem>>, vector<1x64xf32>
    %3 = vector.broadcast %0 : vector<16x1xf32> to vector<16x64xf32>
    %4 = vector.broadcast %2 : vector<1x64xf32> to vector<16x64xf32>
    %5 = arith.mulf %3, %4 : vector<16x64xf32>
    %c1_4 = arith.constant 1 : index
    %c0_5 = arith.constant 0 : index
    %6 = vector.load %arg2[%c1_4, %c0_5] : memref<2x64xf32, #tpu.memory_space<vmem>>, vector<1x64xf32>
    %7 = vector.broadcast %1 : vector<16x1xf32> to vector<16x64xf32>
    %8 = vector.broadcast %6 : vector<1x64xf32> to vector<16x64xf32>
    %9 = arith.mulf %7, %8 : vector<16x64xf32>
    %10 = arith.addf %5, %9 : vector<16x64xf32>
    %c0_6 = arith.constant 0 : index
    %c0_7 = arith.constant 0 : index
    %11 = vector.load %arg3[%c0_6, %c0_7] : memref<1x64xf32, #tpu.memory_space<vmem>>, vector<1x64xf32>
    %12 = vector.broadcast %11 : vector<1x64xf32> to vector<16x64xf32>
    %13 = arith.addf %10, %12 : vector<16x64xf32>
    %cst = arith.constant 0.000000e+00 : f32
    %14 = vector.broadcast %cst : f32 to vector<16x64xf32>
    %15 = arith.maximumf %13, %14 : vector<16x64xf32>
    %c0_8 = arith.constant 0 : index
    %c0_9 = arith.constant 0 : index
    %16 = vector.load %arg4[%c0_8, %c0_9] : memref<64x64xf32, #tpu.memory_space<vmem>>, vector<64x64xf32>
    %cst_10 = arith.constant dense<0.000000e+00> : vector<16x64xf32>
    %17 = tpu.matmul %15, %16, %cst_10 {dimension_numbers = #tpu.dot_dimension_numbers<[1], [0], [0], [1], [0, 0, 1, 1], [], []>} : vector<16x64xf32>, vector<64x64xf32>, vector<16x64xf32> -> vector<16x64xf32>
    %c0_11 = arith.constant 0 : index
    %c0_12 = arith.constant 0 : index
    %18 = vector.load %arg5[%c0_11, %c0_12] : memref<1x64xf32, #tpu.memory_space<vmem>>, vector<1x64xf32>
    %19 = vector.broadcast %18 : vector<1x64xf32> to vector<16x64xf32>
    %20 = arith.addf %17, %19 : vector<16x64xf32>
    %cst_13 = arith.constant 0.000000e+00 : f32
    %21 = vector.broadcast %cst_13 : f32 to vector<16x64xf32>
    %22 = arith.maximumf %20, %21 : vector<16x64xf32>
    %c0_14 = arith.constant 0 : index
    %c0_15 = arith.constant 0 : index
    %23 = vector.load %arg6[%c0_14, %c0_15] : memref<64x64xf32, #tpu.memory_space<vmem>>, vector<64x64xf32>
    %cst_16 = arith.constant dense<0.000000e+00> : vector<16x64xf32>
    %24 = tpu.matmul %22, %23, %cst_16 {dimension_numbers = #tpu.dot_dimension_numbers<[1], [0], [0], [1], [0, 0, 1, 1], [], []>} : vector<16x64xf32>, vector<64x64xf32>, vector<16x64xf32> -> vector<16x64xf32>
    %c0_17 = arith.constant 0 : index
    %c0_18 = arith.constant 0 : index
    %25 = vector.load %arg7[%c0_17, %c0_18] : memref<1x64xf32, #tpu.memory_space<vmem>>, vector<1x64xf32>
    %26 = vector.broadcast %25 : vector<1x64xf32> to vector<16x64xf32>
    %27 = arith.addf %24, %26 : vector<16x64xf32>
    %cst_19 = arith.constant 0.000000e+00 : f32
    %28 = vector.broadcast %cst_19 : f32 to vector<16x64xf32>
    %29 = arith.maximumf %27, %28 : vector<16x64xf32>
    %c0_20 = arith.constant 0 : index
    %c0_21 = arith.constant 0 : index
    %30 = vector.load %arg8[%c0_20, %c0_21] : memref<64x36xf32, #tpu.memory_space<vmem>>, vector<64x36xf32>
    %cst_22 = arith.constant dense<0.000000e+00> : vector<16x36xf32>
    %31 = tpu.matmul %29, %30, %cst_22 {dimension_numbers = #tpu.dot_dimension_numbers<[1], [0], [0], [1], [0, 0, 1, 1], [], []>} : vector<16x64xf32>, vector<64x36xf32>, vector<16x36xf32> -> vector<16x36xf32>
    %c0_23 = arith.constant 0 : index
    %c0_24 = arith.constant 0 : index
    %32 = vector.load %arg9[%c0_23, %c0_24] : memref<1x36xf32, #tpu.memory_space<vmem>>, vector<1x36xf32>
    %33 = vector.broadcast %32 : vector<1x36xf32> to vector<16x36xf32>
    %34 = arith.addf %31, %33 : vector<16x36xf32>
    %c0_25 = arith.constant 0 : index
    %c0_26 = arith.constant 0 : index
    %35 = vector.load %arg10[%c0_25, %c0_26] : memref<16x36xf32, #tpu.memory_space<vmem>>, vector<16x36xf32>
    tpu.vector_store %arg10[%c0_25, %c0_26], %34 {strides = array<i32>} : memref<16x36xf32, #tpu.memory_space<vmem>>, vector<16x36xf32>,
    return
  }
  func.func @transform_0(%arg0: i32) -> (i32, i32) {
    %c0_i32 = arith.constant 0 : i32
    %c0_i32_0 = arith.constant 0 : i32
    return %arg0, %c0_i32 : i32, i32
  }
  func.func @transform_1(%arg0: i32) -> (i32, i32) {
    %c0_i32 = arith.constant 0 : i32
    %c0_i32_0 = arith.constant 0 : i32
    %c0_i32_1 = arith.constant 0 : i32
    return %c0_i32, %c0_i32_0 : i32, i32
  }
  func.func @transform_2(%arg0: i32) -> (i32, i32) {
    %c0_i32 = arith.constant 0 : i32
    %c0_i32_0 = arith.constant 0 : i32
    %c0_i32_1 = arith.constant 0 : i32
    return %c0_i32, %c0_i32_0 : i32, i32
  }
  func.func @transform_3(%arg0: i32) -> (i32, i32) {
    %c0_i32 = arith.constant 0 : i32
    %c0_i32_0 = arith.constant 0 : i32
    %c0_i32_1 = arith.constant 0 : i32
    return %c0_i32, %c0_i32_0 : i32, i32
  }
  func.func @transform_4(%arg0: i32) -> (i32, i32) {
    %c0_i32 = arith.constant 0 : i32
    %c0_i32_0 = arith.constant 0 : i32
    %c0_i32_1 = arith.constant 0 : i32
    return %c0_i32, %c0_i32_0 : i32, i32
  }
  func.func @transform_5(%arg0: i32) -> (i32, i32) {
    %c0_i32 = arith.constant 0 : i32
    %c0_i32_0 = arith.constant 0 : i32
    %c0_i32_1 = arith.constant 0 : i32
    return %c0_i32, %c0_i32_0 : i32, i32
  }
  func.func @transform_6(%arg0: i32) -> (i32, i32) {
    %c0_i32 = arith.constant 0 : i32
    %c0_i32_0 = arith.constant 0 : i32
    %c0_i32_1 = arith.constant 0 : i32
    return %c0_i32, %c0_i32_0 : i32, i32
  }
  func.func @transform_7(%arg0: i32) -> (i32, i32) {
    %c0_i32 = arith.constant 0 : i32
    %c0_i32_0 = arith.constant 0 : i32
    %c0_i32_1 = arith.constant 0 : i32
    return %c0_i32, %c0_i32_0 : i32, i32
  }
  func.func @transform_8(%arg0: i32) -> (i32, i32) {
    %c0_i32 = arith.constant 0 : i32
    %c0_i32_0 = arith.constant 0 : i32
    %c0_i32_1 = arith.constant 0 : i32
    return %c0_i32, %c0_i32_0 : i32, i32
  }
  func.func @transform_9(%arg0: i32) -> (i32, i32) {
    %c0_i32 = arith.constant 0 : i32
    %c0_i32_0 = arith.constant 0 : i32
    return %arg0, %c0_i32 : i32, i32
  }
}

</mosaic_0001>

<llo_original>
// kernel: tpu_custom_call.1
$region0: #{tpu_custom_call.1}
  #allocation0 [shape = 'u32[]', space=smem, size = 0x4, offset = 0x4, fixed_abs, tag = 'smem constant byte address 0x4 - core index']
  #allocation1 [shape = 'u32[144,128]{1,0:T(1,128)}', space=vmem, size = 0x12000, scoped, tag = 'internal scratch']
  %s0 = inlined_call_operand.hbm [shape: f32[16,2], index: 0, kind: input, shape index: {}]
  %s1 = inlined_call_operand.hbm [shape: f32[2,64], index: 1, kind: input, shape index: {}]
  %s2 = inlined_call_operand.hbm [shape: f32[1,64], index: 2, kind: input, shape index: {}]
  %s3 = inlined_call_operand.hbm [shape: f32[64,64], index: 3, kind: input, shape index: {}]
  %s4 = inlined_call_operand.hbm [shape: f32[1,64], index: 4, kind: input, shape index: {}]
  %s5 = inlined_call_operand.hbm [shape: f32[64,64], index: 5, kind: input, shape index: {}]
  %s6 = inlined_call_operand.hbm [shape: f32[1,64], index: 6, kind: input, shape index: {}]
  %s7 = inlined_call_operand.hbm [shape: f32[64,36], index: 7, kind: input, shape index: {}]
  %s8 = inlined_call_operand.hbm [shape: f32[1,36], index: 8, kind: input, shape index: {}]
  %s9 = inlined_call_operand.hbm [shape: f32[16,36], index: 9, kind: output, shape index: {}]
  %s10 = sld [smem:[#allocation0]]
  $region82: #{tpu_custom_call.1} parent=0
    _
  %s12 = ssub.s32 1, %s10
  %s13 = scalar_select 0, %s12, %s10
  $region1: #{tpu_custom_call.1} parent=0
    #allocation2 [shape = 'u8[8192]{0}', space=vmem, size = 0x2000, scoped, tag = 'input window, operand 0, single buffered']
    #allocation3 [shape = 's32[1]{0}', space=sflag, size = 0x4, scoped, tag = 'scoped memory for tpu_custom_call.1']
    #allocation4 [shape = 's32[1]{0}', space=sflag, size = 0x4, scoped, tag = 'scoped memory for tpu_custom_call.1']
    #allocation5 [shape = 'u8[1024]{0}', space=vmem, size = 0x400, scoped, tag = 'input window, operand 1, single buffered']
    #allocation6 [shape = 's32[1]{0}', space=sflag, size = 0x4, scoped, tag = 'scoped memory for tpu_custom_call.1']
    #allocation7 [shape = 'u8[512]{0}', space=vmem, size = 0x400, scoped, tag = 'input window, operand 2, single buffered']
    #allocation8 [shape = 'u8[32768]{0}', space=vmem, size = 0x8000, scoped, tag = 'input window, operand 3, single buffered']
    #allocation9 [shape = 's32[1]{0}', space=sflag, size = 0x4, scoped, tag = 'scoped memory for tpu_custom_call.1']
    #allocation10 [shape = 'u8[512]{0}', space=vmem, size = 0x400, scoped, tag = 'input window, operand 4, single buffered']
    #allocation11 [shape = 'u8[32768]{0}', space=vmem, size = 0x8000, scoped, tag = 'input window, operand 5, single buffered']
    #allocation12 [shape = 's32[1]{0}', space=sflag, size = 0x4, scoped, tag = 'scoped memory for tpu_custom_call.1']
    #allocation13 [shape = 'u8[512]{0}', space=vmem, size = 0x400, scoped, tag = 'input window, operand 6, single buffered']
    #allocation14 [shape = 'u8[32768]{0}', space=vmem, size = 0x8000, scoped, tag = 'input window, operand 7, single buffered']
    #allocation15 [shape = 's32[1]{0}', space=sflag, size = 0x4, scoped, tag = 'scoped memory for tpu_custom_call.1']
    #allocation16 [shape = 'u8[512]{0}', space=vmem, size = 0x400, scoped, tag = 'input window, operand 8, single buffered']
    #allocation17 [shape = 'u8[8192]{0}', space=vmem, size = 0x2000, scoped, tag = 'output window, operand 0, single buffered']
    %14 = vsyncpa [#allocation3], 0
    %15 = vsyncpa [#allocation6], 0
    %16 = vsyncpa [#allocation9], 0
    %17 = vsyncpa [#allocation12], 0
    %18 = vsyncpa [#allocation15], 0
    %19 = vsyncpa [#allocation4], 0
    // Predicated region
    $region2: #{tpu_custom_call.1} parent=1 // pred_check
      _
    $region3: #{tpu_custom_call.1} parent=1 // pred_check_branch
      %21 = sbr.rel (0) target = $region5
    $region4: #{tpu_custom_call.1} parent=1 // pred_region
      %s23 = ssub.s32 256, 256
      %24 = vsyncadd [#allocation3], %s23
      %s25 = sshll.u32 [#allocation2], 4
      %s26 = int_to_ptr.vmem [resolvable:$true] %s25
      %31 = dma.hbm_to_vmem [thread:$0]  %s0, 256, %s26, [#allocation3], 128, 128, 8
    $region5: #{tpu_custom_call.1} parent=1 // pred_fallthru
      _
    // Predicated region
    $region6: #{tpu_custom_call.1} parent=1 // pred_check
      _
    $region7: #{tpu_custom_call.1} parent=1 // pred_check_branch
      %33 = sbr.rel (0) target = $region9
    $region8: #{tpu_custom_call.1} parent=1 // pred_region
      %s35 = ssub.s32 32, 32
      %36 = vsyncadd [#allocation6], %s35
      %s38 = sshll.u32 [#allocation5], 4
      %s39 = int_to_ptr.vmem [resolvable:$true] %s38
      %41 = dma.hbm_to_vmem [thread:$0]  %s1, 32, %s39, [#allocation6]
    $region9: #{tpu_custom_call.1} parent=1 // pred_fallthru
      _
    // Predicated region
    $region10: #{tpu_custom_call.1} parent=1 // pred_check
      _
    $region11: #{tpu_custom_call.1} parent=1 // pred_check_branch
      %43 = sbr.rel (0) target = $region13
    $region12: #{tpu_custom_call.1} parent=1 // pred_region
      %s45 = ssub.s32 16, 16
      %46 = vsyncadd [#allocation6], %s45
      %s48 = sshll.u32 [#allocation7], 4
      %s49 = int_to_ptr.vmem [resolvable:$true] %s48
      %51 = dma.hbm_to_vmem [thread:$0]  %s2, 16, %s49, [#allocation6]
    $region13: #{tpu_custom_call.1} parent=1 // pred_fallthru
      _
    // Predicated region
    $region14: #{tpu_custom_call.1} parent=1 // pred_check
      _
    $region15: #{tpu_custom_call.1} parent=1 // pred_check_branch
      %53 = sbr.rel (0) target = $region17
    $region16: #{tpu_custom_call.1} parent=1 // pred_region
      %s55 = ssub.s32 1024, 1024
      %56 = vsyncadd [#allocation9], %s55
      %s57 = sshll.u32 [#allocation8], 4
      %s58 = int_to_ptr.vmem [resolvable:$true] %s57
      %63 = dma.hbm_to_vmem [thread:$0]  %s3, 1024, %s58, [#allocation9], 128, 128, 8
    $region17: #{tpu_custom_call.1} parent=1 // pred_fallthru
      _
    // Predicated region
    $region18: #{tpu_custom_call.1} parent=1 // pred_check
      _
    $region19: #{tpu_custom_call.1} parent=1 // pred_check_branch
      %65 = sbr.rel (0) target = $region21
    $region20: #{tpu_custom_call.1} parent=1 // pred_region
      %s67 = ssub.s32 16, 16
      %68 = vsyncadd [#allocation9], %s67
      %s70 = sshll.u32 [#allocation10], 4
      %s71 = int_to_ptr.vmem [resolvable:$true] %s70
      %73 = dma.hbm_to_vmem [thread:$0]  %s4, 16, %s71, [#allocation9]
    $region21: #{tpu_custom_call.1} parent=1 // pred_fallthru
      _
    // Predicated region
    $region22: #{tpu_custom_call.1} parent=1 // pred_check
      _
    $region23: #{tpu_custom_call.1} parent=1 // pred_check_branch
      %75 = sbr.rel (0) target = $region25
    $region24: #{tpu_custom_call.1} parent=1 // pred_region
      %s77 = ssub.s32 1024, 1024
      %78 = vsyncadd [#allocation12], %s77
      %s79 = sshll.u32 [#allocation11], 4
      %s80 = int_to_ptr.vmem [resolvable:$true] %s79
      %85 = dma.hbm_to_vmem [thread:$0]  %s5, 1024, %s80, [#allocation12], 128, 128, 8
    $region25: #{tpu_custom_call.1} parent=1 // pred_fallthru
      _
    // Predicated region
    $region26: #{tpu_custom_call.1} parent=1 // pred_check
      _
    $region27: #{tpu_custom_call.1} parent=1 // pred_check_branch
      %87 = sbr.rel (0) target = $region29
    $region28: #{tpu_custom_call.1} parent=1 // pred_region
      %s89 = ssub.s32 16, 16
      %90 = vsyncadd [#allocation12], %s89
      %s92 = sshll.u32 [#allocation13], 4
      %s93 = int_to_ptr.vmem [resolvable:$true] %s92
      %95 = dma.hbm_to_vmem [thread:$0]  %s6, 16, %s93, [#allocation12]
    $region29: #{tpu_custom_call.1} parent=1 // pred_fallthru
      _
    // Predicated region
    $region30: #{tpu_custom_call.1} parent=1 // pred_check
      _
    $region31: #{tpu_custom_call.1} parent=1 // pred_check_branch
      %97 = sbr.rel (0) target = $region33
    $region32: #{tpu_custom_call.1} parent=1 // pred_region
      %s99 = ssub.s32 1024, 1024
      %100 = vsyncadd [#allocation15], %s99
      %s101 = sshll.u32 [#allocation14], 4
      %s102 = int_to_ptr.vmem [resolvable:$true] %s101
      %107 = dma.hbm_to_vmem [thread:$0]  %s7, 1024, %s102, [#allocation15], 128, 128, 8
    $region33: #{tpu_custom_call.1} parent=1 // pred_fallthru
      _
    // Predicated region
    $region34: #{tpu_custom_call.1} parent=1 // pred_check
      _
    $region35: #{tpu_custom_call.1} parent=1 // pred_check_branch
      %109 = sbr.rel (0) target = $region37
    $region36: #{tpu_custom_call.1} parent=1 // pred_region
      %s111 = ssub.s32 16, 16
      %112 = vsyncadd [#allocation15], %s111
      %s114 = sshll.u32 [#allocation16], 4
      %s115 = int_to_ptr.vmem [resolvable:$true] %s114
      %117 = dma.hbm_to_vmem [thread:$0]  %s8, 16, %s115, [#allocation15]
    $region37: #{tpu_custom_call.1} parent=1 // pred_fallthru
      _
    // Predicated region
    $region38: #{tpu_custom_call.1} parent=1 // pred_check
      _
    $region39: #{tpu_custom_call.1} parent=1 // pred_check_branch
      %119 = sbr.rel (0) target = $region41
    $region40: #{tpu_custom_call.1} parent=1 // pred_region
      %120 = dma.done [#allocation3], 256
    $region41: #{tpu_custom_call.1} parent=1 // pred_fallthru
      _
    // Predicated region
    $region42: #{tpu_custom_call.1} parent=1 // pred_check
      _
    $region43: #{tpu_custom_call.1} parent=1 // pred_check_branch
      %122 = sbr.rel (0) target = $region45
    $region44: #{tpu_custom_call.1} parent=1 // pred_region
      %123 = dma.done [#allocation6], 32
    $region45: #{tpu_custom_call.1} parent=1 // pred_fallthru
      _
    // Predicated region
    $region46: #{tpu_custom_call.1} parent=1 // pred_check
      _
    $region47: #{tpu_custom_call.1} parent=1 // pred_check_branch
      %125 = sbr.rel (0) target = $region49
    $region48: #{tpu_custom_call.1} parent=1 // pred_region
      %126 = dma.done [#allocation6], 16
    $region49: #{tpu_custom_call.1} parent=1 // pred_fallthru
      _
    // Predicated region
    $region50: #{tpu_custom_call.1} parent=1 // pred_check
      _
    $region51: #{tpu_custom_call.1} parent=1 // pred_check_branch
      %128 = sbr.rel (0) target = $region53
    $region52: #{tpu_custom_call.1} parent=1 // pred_region
      %129 = dma.done [#allocation9], 1024
    $region53: #{tpu_custom_call.1} parent=1 // pred_fallthru
      _
    // Predicated region
    $region54: #{tpu_custom_call.1} parent=1 // pred_check
      _
    $region55: #{tpu_custom_call.1} parent=1 // pred_check_branch
      %131 = sbr.rel (0) target = $region57
    $region56: #{tpu_custom_call.1} parent=1 // pred_region
      %132 = dma.done [#allocation9], 16
    $region57: #{tpu_custom_call.1} parent=1 // pred_fallthru
      _
    // Predicated region
    $region58: #{tpu_custom_call.1} parent=1 // pred_check
      _
    $region59: #{tpu_custom_call.1} parent=1 // pred_check_branch
      %134 = sbr.rel (0) target = $region61
    $region60: #{tpu_custom_call.1} parent=1 // pred_region
      %135 = dma.done [#allocation12], 1024
    $region61: #{tpu_custom_call.1} parent=1 // pred_fallthru
      _
    // Predicated region
    $region62: #{tpu_custom_call.1} parent=1 // pred_check
      _
    $region63: #{tpu_custom_call.1} parent=1 // pred_check_branch
      %137 = sbr.rel (0) target = $region65
    $region64: #{tpu_custom_call.1} parent=1 // pred_region
      %138 = dma.done [#allocation12], 16
    $region65: #{tpu_custom_call.1} parent=1 // pred_fallthru
      _
    // Predicated region
    $region66: #{tpu_custom_call.1} parent=1 // pred_check
      _
    $region67: #{tpu_custom_call.1} parent=1 // pred_check_branch
      %140 = sbr.rel (0) target = $region69
    $region68: #{tpu_custom_call.1} parent=1 // pred_region
      %141 = dma.done [#allocation15], 1024
    $region69: #{tpu_custom_call.1} parent=1 // pred_fallthru
      _
    // Predicated region
    $region70: #{tpu_custom_call.1} parent=1 // pred_check
      _
    $region71: #{tpu_custom_call.1} parent=1 // pred_check_branch
      %143 = sbr.rel (0) target = $region73
    $region72: #{tpu_custom_call.1} parent=1 // pred_region
      %144 = dma.done [#allocation15], 16
    $region73: #{tpu_custom_call.1} parent=1 // pred_fallthru
      _
    %v145 = vld [vmem:[#allocation2] sm:$0xff]
    %v146 = vld [vmem:[#allocation2 + $0x8] sm:$0xff]
    %v147 = vld [vmem:[#allocation5] sm:$0x1]
    %149 = vset.pattern.permute.xlu0 0
    %150 = vperm.xlu0 %149, %v145
    %v151 = vpop.permute.xlu0 %150
    %154 = vset.pattern.permute.xlu0 0
    %155 = vperm.xlu0 %154, %v146
    %v156 = vpop.permute.xlu0 %155
    %v158 = vlaneseq
    %v159 = vshrl.u32 %v158, 7
    %v160 = vsub.s32 0, %v159
    %v161 = vrot.slane %v147, %v160
    %v162 = vmul.f32 %v151, %v161
    %v163 = vmul.f32 %v156, %v161
    %v164 = vld [vmem:[#allocation5 + $0x1] sm:$0x1]
    %165 = vset.pattern.permute.xlu0 1
    %166 = vperm.xlu0 %165, %v145
    %v167 = vpop.permute.xlu0 %166
    %169 = vset.pattern.permute.xlu0 1
    %170 = vperm.xlu0 %169, %v146
    %v171 = vpop.permute.xlu0 %170
    %v173 = vlaneseq
    %v174 = vshrl.u32 %v173, 7
    %v175 = vsub.s32 0, %v174
    %v176 = vrot.slane %v164, %v175
    %v177 = vmul.f32 %v167, %v176
    %v178 = vmul.f32 %v171, %v176
    %v179 = vadd.f32 %v162, %v177
    %v180 = vadd.f32 %v163, %v178
    %v181 = vld [vmem:[#allocation7] sm:$0x1]
    %v183 = vlaneseq
    %v184 = vshrl.u32 %v183, 7
    %v185 = vsub.s32 0, %v184
    %v186 = vrot.slane %v181, %v185
    %v188 = vadd.f32 %v179, %v186
    %v189 = vadd.f32 %v180, %v186
    %v190 = vmax.f32 %v188, 0.0
    %v191 = vmax.f32 %v189, 0.0
    %v192 = vld [vmem:[#allocation8] sm:$0xff]
    %v193 = vld [vmem:[#allocation8 + $0x8] sm:$0xff]
    %v194 = vld [vmem:[#allocation8 + $0x10] sm:$0xff]
    %v195 = vld [vmem:[#allocation8 + $0x18] sm:$0xff]
    %v196 = vld [vmem:[#allocation8 + $0x20] sm:$0xff]
    %v197 = vld [vmem:[#allocation8 + $0x28] sm:$0xff]
    %v198 = vld [vmem:[#allocation8 + $0x30] sm:$0xff]
    %v199 = vld [vmem:[#allocation8 + $0x38] sm:$0xff]
    %v200 = vld [vmem:[#allocation10] sm:$0x1]
    %v202 = vlaneseq
    %v203 = vshrl.u32 %v202, 7
    %v204 = vsub.s32 0, %v203
    %v205 = vrot.slane %v200, %v204
    %vm207 = vcmask 523264
    %v209 = vsel %vm207, %v190, 0
    %v212 = vsel %vm207, %v191, 0
    %214 = vmatprep.subr.mxu0 0.0
    %215 = vmatpush1.msra.mxu0 %v192
    %216 = vmatprep.subr.mxu0 0.0
    %217 = vmatpush1.msra.mxu0 %v193
    %218 = vmatprep.subr.mxu0 0.0
    %219 = vmatpush1.msra.mxu0 %v194
    %220 = vmatprep.subr.mxu0 0.0
    %221 = vmatpush1.msra.mxu0 %v195
    %222 = vmatprep.subr.mxu0 0.0
    %223 = vmatpush1.msra.mxu0 %v196
    %224 = vmatprep.subr.mxu0 0.0
    %225 = vmatpush1.msra.mxu0 %v197
    %226 = vmatprep.subr.mxu0 0.0
    %227 = vmatpush1.msra.mxu0 %v198
    %228 = vmatprep.subr.mxu0 0.0
    %229 = vmatpush1.msra.mxu0 %v199
    %230 = vmatprep.subr.mxu0 0.0
    %231 = vmatpush1.msra.mxu0 0.0
    %232 = vmatprep.subr.mxu0 0.0
    %233 = vmatpush1.msra.mxu0 0.0
    %234 = vmatprep.subr.mxu0 0.0
    %235 = vmatpush1.msra.mxu0 0.0
    %236 = vmatprep.subr.mxu0 0.0
    %237 = vmatpush1.msra.mxu0 0.0
    %238 = vmatprep.subr.mxu0 0.0
    %239 = vmatpush1.msra.mxu0 0.0
    %240 = vmatprep.subr.mxu0 0.0
    %241 = vmatpush1.msra.mxu0 0.0
    %242 = vmatprep.subr.mxu0 0.0
    %243 = vmatpush1.msra.mxu0 0.0
    %244 = vmatprep.subr.mxu0 0.0
    %245 = vmatpush1.msra.mxu0 0.0
    %246 = vmatprep.subr.mxu0 0.0
    %247 = vmatpush1.msra.mxu0 0.0
    %248 = vmatprep.subr.mxu0 0.0
    %249 = vmatpush1.msra.mxu0 0.0
    %250 = vmatprep.subr.mxu0 0.0
    %251 = vmatpush1.msra.mxu0 0.0
    %252 = vmatprep.subr.mxu0 0.0
    %253 = vmatpush1.msra.mxu0 0.0
    %254 = vmatprep.subr.mxu0 0.0
    %255 = vmatpush1.msra.mxu0 0.0
    %256 = vmatprep.subr.mxu0 0.0
    %257 = vmatpush1.msra.mxu0 0.0
    %258 = vmatprep.subr.mxu0 0.0
    %259 = vmatpush1.msra.mxu0 0.0
    %260 = vmatprep.subr.mxu0 0.0
    %261 = vmatpush1.msra.mxu0 0.0
    %262 = vmatprep.subr.mxu0 0.0
    %263 = vmatpush1.msra.mxu0 0.0
    %264 = vmatprep.subr.mxu0 0.0
    %265 = vmatpush1.msra.mxu0 0.0
    %266 = vmatprep.subr.mxu0 0.0
    %267 = vmatpush1.msra.mxu0 0.0
    %268 = vmatprep.subr.mxu0 0.0
    %269 = vmatpush1.msra.mxu0 0.0
    %270 = vmatprep.subr.mxu0 0.0
    %271 = vmatpush1.msra.mxu0 0.0
    %272 = vmatprep.subr.mxu0 0.0
    %273 = vmatpush1.msra.mxu0 0.0
    %274 = vmatprep.subr.mxu0 0.0
    %275 = vmatpush1.msra.mxu0 0.0
    %276 = vmatprep.subr.mxu0 0.0
    %277 = vmatpush1.msra.mxu0 0.0
    %278 = vmatprep.mubr.f32.mxu0 0.0
    %279 = vmatmul.mubr.f32.gmra.mrb[0].mxu0 %v209
    %v280 = vpop.f32.mrb[0].mxu0
    %v281 = vadd.f32 %v205, %v280
    %v282 = vpop.f32.mrb[0].mxu0
    %283 = vmatprep.mubr.f32.mxu0 0.0
    %284 = vmatmul.mubr.f32.gmra.mrb[0].mxu0 %v212
    %v285 = vpop.f32.mrb[0].mxu0
    %v286 = vadd.f32 %v205, %v285
    %v287 = vpop.f32.mrb[0].mxu0
    %288 = vdwg.mxu0
    %v289 = vmax.f32 %v281, 0.0
    %v290 = vmax.f32 %v286, 0.0
    %v291 = vld [vmem:[#allocation11] sm:$0xff]
    %v292 = vld [vmem:[#allocation11 + $0x8] sm:$0xff]
    %v293 = vld [vmem:[#allocation11 + $0x10] sm:$0xff]
    %v294 = vld [vmem:[#allocation11 + $0x18] sm:$0xff]
    %v295 = vld [vmem:[#allocation11 + $0x20] sm:$0xff]
    %v296 = vld [vmem:[#allocation11 + $0x28] sm:$0xff]
    %v297 = vld [vmem:[#allocation11 + $0x30] sm:$0xff]
    %v298 = vld [vmem:[#allocation11 + $0x38] sm:$0xff]
    %v299 = vld [vmem:[#allocation13] sm:$0x1]
    %v301 = vlaneseq
    %v302 = vshrl.u32 %v301, 7
    %v303 = vsub.s32 0, %v302
    %v304 = vrot.slane %v299, %v303
    %v307 = vsel %vm207, %v289, 0
    %v310 = vsel %vm207, %v290, 0
    %312 = vmatprep.subr.mxu0 0.0
    %313 = vmatpush1.msra.mxu0 %v291
    %314 = vmatprep.subr.mxu0 0.0
    %315 = vmatpush1.msra.mxu0 %v292
    %316 = vmatprep.subr.mxu0 0.0
    %317 = vmatpush1.msra.mxu0 %v293
    %318 = vmatprep.subr.mxu0 0.0
    %319 = vmatpush1.msra.mxu0 %v294
    %320 = vmatprep.subr.mxu0 0.0
    %321 = vmatpush1.msra.mxu0 %v295
    %322 = vmatprep.subr.mxu0 0.0
    %323 = vmatpush1.msra.mxu0 %v296
    %324 = vmatprep.subr.mxu0 0.0
    %325 = vmatpush1.msra.mxu0 %v297
    %326 = vmatprep.subr.mxu0 0.0
    %327 = vmatpush1.msra.mxu0 %v298
    %328 = vmatprep.subr.mxu0 0.0
    %329 = vmatpush1.msra.mxu0 0.0
    %330 = vmatprep.subr.mxu0 0.0
    %331 = vmatpush1.msra.mxu0 0.0
    %332 = vmatprep.subr.mxu0 0.0
    %333 = vmatpush1.msra.mxu0 0.0
    %334 = vmatprep.subr.mxu0 0.0
    %335 = vmatpush1.msra.mxu0 0.0
    %336 = vmatprep.subr.mxu0 0.0
    %337 = vmatpush1.msra.mxu0 0.0
    %338 = vmatprep.subr.mxu0 0.0
    %339 = vmatpush1.msra.mxu0 0.0
    %340 = vmatprep.subr.mxu0 0.0
    %341 = vmatpush1.msra.mxu0 0.0
    %342 = vmatprep.subr.mxu0 0.0
    %343 = vmatpush1.msra.mxu0 0.0
    %344 = vmatprep.subr.mxu0 0.0
    %345 = vmatpush1.msra.mxu0 0.0
    %346 = vmatprep.subr.mxu0 0.0
    %347 = vmatpush1.msra.mxu0 0.0
    %348 = vmatprep.subr.mxu0 0.0
    %349 = vmatpush1.msra.mxu0 0.0
    %350 = vmatprep.subr.mxu0 0.0
    %351 = vmatpush1.msra.mxu0 0.0
    %352 = vmatprep.subr.mxu0 0.0
    %353 = vmatpush1.msra.mxu0 0.0
    %354 = vmatprep.subr.mxu0 0.0
    %355 = vmatpush1.msra.mxu0 0.0
    %356 = vmatprep.subr.mxu0 0.0
    %357 = vmatpush1.msra.mxu0 0.0
    %358 = vmatprep.subr.mxu0 0.0
    %359 = vmatpush1.msra.mxu0 0.0
    %360 = vmatprep.subr.mxu0 0.0
    %361 = vmatpush1.msra.mxu0 0.0
    %362 = vmatprep.subr.mxu0 0.0
    %363 = vmatpush1.msra.mxu0 0.0
    %364 = vmatprep.subr.mxu0 0.0
    %365 = vmatpush1.msra.mxu0 0.0
    %366 = vmatprep.subr.mxu0 0.0
    %367 = vmatpush1.msra.mxu0 0.0
    %368 = vmatprep.subr.mxu0 0.0
    %369 = vmatpush1.msra.mxu0 0.0
    %370 = vmatprep.subr.mxu0 0.0
    %371 = vmatpush1.msra.mxu0 0.0
    %372 = vmatprep.subr.mxu0 0.0
    %373 = vmatpush1.msra.mxu0 0.0
    %374 = vmatprep.subr.mxu0 0.0
    %375 = vmatpush1.msra.mxu0 0.0
    %376 = vmatprep.mubr.f32.mxu0 0.0
    %377 = vmatmul.mubr.f32.gmra.mrb[0].mxu0 %v307
    %v378 = vpop.f32.mrb[0].mxu0
    %v379 = vadd.f32 %v304, %v378
    %v380 = vpop.f32.mrb[0].mxu0
    %381 = vmatprep.mubr.f32.mxu0 0.0
    %382 = vmatmul.mubr.f32.gmra.mrb[0].mxu0 %v310
    %v383 = vpop.f32.mrb[0].mxu0
    %v384 = vadd.f32 %v304, %v383
    %v385 = vpop.f32.mrb[0].mxu0
    %386 = vdwg.mxu0
    %v387 = vmax.f32 %v379, 0.0
    %v388 = vmax.f32 %v384, 0.0
    %v389 = vld [vmem:[#allocation14] sm:$0xff]
    %v390 = vld [vmem:[#allocation14 + $0x8] sm:$0xff]
    %v391 = vld [vmem:[#allocation14 + $0x10] sm:$0xff]
    %v392 = vld [vmem:[#allocation14 + $0x18] sm:$0xff]
    %v393 = vld [vmem:[#allocation14 + $0x20] sm:$0xff]
    %v394 = vld [vmem:[#allocation14 + $0x28] sm:$0xff]
    %v395 = vld [vmem:[#allocation14 + $0x30] sm:$0xff]
    %v396 = vld [vmem:[#allocation14 + $0x38] sm:$0xff]
    %v397 = vld [vmem:[#allocation16] sm:$0x1]
    %v399 = vlaneseq
    %v400 = vshrl.u32 %v399, 7
    %v401 = vsub.s32 0, %v400
    %v402 = vrot.slane %v397, %v401
    %v405 = vsel %vm207, %v387, 0
    %v408 = vsel %vm207, %v388, 0
    %410 = vmatprep.subr.mxu0 0.0
    %411 = vmatpush1.msra.mxu0 %v389
    %412 = vmatprep.subr.mxu0 0.0
    %413 = vmatpush1.msra.mxu0 %v390
    %414 = vmatprep.subr.mxu0 0.0
    %415 = vmatpush1.msra.mxu0 %v391
    %416 = vmatprep.subr.mxu0 0.0
    %417 = vmatpush1.msra.mxu0 %v392
    %418 = vmatprep.subr.mxu0 0.0
    %419 = vmatpush1.msra.mxu0 %v393
    %420 = vmatprep.subr.mxu0 0.0
    %421 = vmatpush1.msra.mxu0 %v394
    %422 = vmatprep.subr.mxu0 0.0
    %423 = vmatpush1.msra.mxu0 %v395
    %424 = vmatprep.subr.mxu0 0.0
    %425 = vmatpush1.msra.mxu0 %v396
    %426 = vmatprep.subr.mxu0 0.0
    %427 = vmatpush1.msra.mxu0 0.0
    %428 = vmatprep.subr.mxu0 0.0
    %429 = vmatpush1.msra.mxu0 0.0
    %430 = vmatprep.subr.mxu0 0.0
    %431 = vmatpush1.msra.mxu0 0.0
    %432 = vmatprep.subr.mxu0 0.0
    %433 = vmatpush1.msra.mxu0 0.0
    %434 = vmatprep.subr.mxu0 0.0
    %435 = vmatpush1.msra.mxu0 0.0
    %436 = vmatprep.subr.mxu0 0.0
    %437 = vmatpush1.msra.mxu0 0.0
    %438 = vmatprep.subr.mxu0 0.0
    %439 = vmatpush1.msra.mxu0 0.0
    %440 = vmatprep.subr.mxu0 0.0
    %441 = vmatpush1.msra.mxu0 0.0
    %442 = vmatprep.subr.mxu0 0.0
    %443 = vmatpush1.msra.mxu0 0.0
    %444 = vmatprep.subr.mxu0 0.0
    %445 = vmatpush1.msra.mxu0 0.0
    %446 = vmatprep.subr.mxu0 0.0
    %447 = vmatpush1.msra.mxu0 0.0
    %448 = vmatprep.subr.mxu0 0.0
    %449 = vmatpush1.msra.mxu0 0.0
    %450 = vmatprep.subr.mxu0 0.0
    %451 = vmatpush1.msra.mxu0 0.0
    %452 = vmatprep.subr.mxu0 0.0
    %453 = vmatpush1.msra.mxu0 0.0
    %454 = vmatprep.subr.mxu0 0.0
    %455 = vmatpush1.msra.mxu0 0.0
    %456 = vmatprep.subr.mxu0 0.0
    %457 = vmatpush1.msra.mxu0 0.0
    %458 = vmatprep.subr.mxu0 0.0
    %459 = vmatpush1.msra.mxu0 0.0
    %460 = vmatprep.subr.mxu0 0.0
    %461 = vmatpush1.msra.mxu0 0.0
    %462 = vmatprep.subr.mxu0 0.0
    %463 = vmatpush1.msra.mxu0 0.0
    %464 = vmatprep.subr.mxu0 0.0
    %465 = vmatpush1.msra.mxu0 0.0
    %466 = vmatprep.subr.mxu0 0.0
    %467 = vmatpush1.msra.mxu0 0.0
    %468 = vmatprep.subr.mxu0 0.0
    %469 = vmatpush1.msra.mxu0 0.0
    %470 = vmatprep.subr.mxu0 0.0
    %471 = vmatpush1.msra.mxu0 0.0
    %472 = vmatprep.subr.mxu0 0.0
    %473 = vmatpush1.msra.mxu0 0.0
    %474 = vmatprep.mubr.f32.mxu0 0.0
    %475 = vmatmul.mubr.f32.gmra.mrb[0].mxu0 %v405
    %v476 = vpop.f32.mrb[0].mxu0
    %v477 = vadd.f32 %v402, %v476
    %v478 = vpop.f32.mrb[0].mxu0
    %479 = vmatprep.mubr.f32.mxu0 0.0
    %480 = vmatmul.mubr.f32.gmra.mrb[0].mxu0 %v408
    %v481 = vpop.f32.mrb[0].mxu0
    %v482 = vadd.f32 %v402, %v481
    %v483 = vpop.f32.mrb[0].mxu0
    %484 = vdwg.mxu0
    %vm485 = vcmask 293888
    %486 = vst.msk [vmem:[#allocation17] sm:$0xff] %vm485, %v477
    %487 = vst.msk [vmem:[#allocation17 + $0x8] sm:$0xff] %vm485, %v482
    // Predicated region
    $region74: #{tpu_custom_call.1} parent=1 // pred_check
      _
    $region75: #{tpu_custom_call.1} parent=1 // pred_check_branch
      %489 = sbr.rel (0) target = $region77
    $region76: #{tpu_custom_call.1} parent=1 // pred_region
      %s491 = ssub.s32 256, 256
      %492 = vsyncadd [#allocation4], %s491
      %s493 = sshll.u32 [#allocation17], 4
      %s494 = int_to_ptr.vmem [resolvable:$true] %s493
      %499 = dma.vmem_to_hbm [thread:$0]  %s494, 256, %s9, [#allocation4], 128, 128, 8
    $region77: #{tpu_custom_call.1} parent=1 // pred_fallthru
      _
    // Predicated region
    $region78: #{tpu_custom_call.1} parent=1 // pred_check
      _
    $region79: #{tpu_custom_call.1} parent=1 // pred_check_branch
      %501 = sbr.rel (0) target = $region81
    $region80: #{tpu_custom_call.1} parent=1 // pred_region
      %502 = dma.done [#allocation4], 256
    $region81: #{tpu_custom_call.1} parent=1 // pred_fallthru
      _
    %503 = vsyncpa [#allocation3], 1
    %504 = vsyncpa [#allocation6], 1
    %505 = vsyncpa [#allocation9], 1
    %506 = vsyncpa [#allocation12], 1
    %507 = vsyncpa [#allocation15], 1
    %508 = vsyncpa [#allocation4], 1

</llo_original>
